<compile_context>
chip_gen: v5e
topology: v5e:2x2
jax: 0.10.0
libtpu: 0.0.40
codegen_flags: <defaults>
</compile_context>

<pallas_src>
import functools

import jax
import jax.numpy as jnp
from jax.experimental import pallas as pl
from jax.experimental.pallas import tpu as pltpu


def _mixup_ce_kernel(lam_ref, logits_ref, ta_ref, tb_ref, out_ref, *, batch, block_rows):
    i = pl.program_id(0)

    logits = logits_ref[...].astype(jnp.float32)                 # (TB, Cp)
    tb_rows, cp = logits.shape

    # Numerically stable per-row log-sum-exp (padded lanes hold -1e30 -> exp == 0).
    row_max = jnp.max(logits, axis=-1, keepdims=True)            # (TB, 1)
    shifted = logits - row_max                                   # (TB, Cp)
    lse = jnp.log(jnp.sum(jnp.exp(shifted), axis=-1, keepdims=True))  # (TB, 1)

    lam = lam_ref[0]

    # Fused mixup one-hot weights: lam at targets_a, (1-lam) at targets_b.  Weights
    # sum to 1 per row (also when ta == tb), so loss_row = lse - sum(w * shifted).
    class_ids = jax.lax.broadcasted_iota(jnp.int32, (1, cp), 1)
    w = jnp.where(class_ids == ta_ref[...], lam, 0.0)
    w = w + jnp.where(class_ids == tb_ref[...], 1.0 - lam, 0.0)
    tgt = jnp.sum(w * shifted, axis=-1, keepdims=True)           # (TB, 1)
    loss_row = lse - tgt                                         # (TB, 1)

    # Mask rows past the true batch (last partial block reads undefined data).
    row_ids = i * block_rows + jax.lax.broadcasted_iota(jnp.int32, (tb_rows, 1), 0)
    loss_row = jnp.where(row_ids < batch, loss_row, 0.0)

    # Lane-dense partial sum for this block (unmasked store; reduced in the wrapper).
    partial = jnp.sum(loss_row)
    out_ref[...] = jnp.zeros_like(out_ref) + partial


def mixup_cross_entropy_loss(logits, targets_a, targets_b, lam, *, tile_rows=None):
    """lam * CE(logits, targets_a) + (1 - lam) * CE(logits, targets_b), mean-reduced."""
    batch, num_classes = logits.shape

    # Lane-dense class dim: pad to a multiple of 128 with a large negative value.
    cp = ((num_classes + 127) // 128) * 128
    if cp != num_classes:
        logits = jnp.pad(logits, ((0, 0), (0, cp - num_classes)), constant_values=-1e30)

    # Batch tile: large enough to approach the HBM roofline, multiple of 8 sublanes,
    # or the whole batch when it is smaller than one tile.
    if tile_rows is None:
        tile_rows = 512 if batch > 512 else batch
    if tile_rows < batch:
        assert tile_rows % 8 == 0, "tile_rows must be a multiple of 8 when tiling"
    num_blocks = pl.cdiv(batch, tile_rows)

    lam_arr = jnp.asarray(lam, dtype=jnp.float32).reshape(1)
    ta = targets_a.astype(jnp.int32).reshape(batch, 1)
    tb = targets_b.astype(jnp.int32).reshape(batch, 1)

    kernel = functools.partial(_mixup_ce_kernel, batch=batch, block_rows=tile_rows)

    partials = pl.pallas_call(
        kernel,
        out_shape=jax.ShapeDtypeStruct((num_blocks, 8, 128), jnp.float32),
        grid=(num_blocks,),
        in_specs=[
            pl.BlockSpec(memory_space=pltpu.SMEM),                # lam (1,) scalar
            pl.BlockSpec((tile_rows, cp), lambda i: (i, 0)),      # logits tile
            pl.BlockSpec((tile_rows, 1), lambda i: (i, 0)),       # targets_a tile
            pl.BlockSpec((tile_rows, 1), lambda i: (i, 0)),       # targets_b tile
        ],
        out_specs=pl.BlockSpec((1, 8, 128), lambda i: (i, 0, 0)),
        compiler_params=pltpu.CompilerParams(
            dimension_semantics=("parallel",),
            vmem_limit_bytes=32 * 1024 * 1024,
        ),
    )(lam_arr, logits, ta, tb)

    # Each block broadcast its partial weighted-NLL sum across the (8, 128) tile;
    # take one lane per block and divide by the GLOBAL batch (mean reduction).
    return jnp.sum(partials[:, 0, 0]) / batch


def _reference(logits, targets_a, targets_b, lam):
    logp = jax.nn.log_softmax(logits.astype(jnp.float32), axis=-1)
    ce_a = -jnp.mean(jnp.take_along_axis(logp, targets_a[:, None].astype(jnp.int32), axis=-1))
    ce_b = -jnp.mean(jnp.take_along_axis(logp, targets_b[:, None].astype(jnp.int32), axis=-1))
    return lam * ce_a + (1.0 - lam) * ce_b


if __name__ == "__main__":
    # Small shapes that exercise class padding (200 -> 256 lanes), batch tiling
    # (grid of 3 blocks of 8 rows) and last-partial-block row masking (20 % 8 != 0).
    B, C = 20, 200
    key = jax.random.PRNGKey(0)
    k1, k2, k3 = jax.random.split(key, 3)

    logits = jax.random.normal(k1, (B, C), dtype=jnp.float32)
    targets_a = jax.random.randint(k2, (B,), 0, C, dtype=jnp.int32)
    targets_b = jax.random.randint(k3, (B,), 0, C, dtype=jnp.int32)
    lam = jnp.float32(0.7)   # traced scalar: changing lam per step does not recompile

    out = mixup_cross_entropy_loss(logits, targets_a, targets_b, lam, tile_rows=8)
    out = jax.block_until_ready(out)

    ref = _reference(logits, targets_a, targets_b, lam)
    assert jnp.allclose(out, ref, atol=1e-4, rtol=1e-5), (out, ref)
    print("KERNEL_OK")
</pallas_src>

<mosaic_0001>
module attributes {stable_mosaic.version = 11 : i64} {
  func.func @_mixup_ce_kernel(%arg0: i32, %arg1: memref<1xf32, #tpu.memory_space<smem>>, %arg2: memref<8x256xf32, #tpu.memory_space<vmem>>, %arg3: memref<8x1xi32, #tpu.memory_space<vmem>>, %arg4: memref<8x1xi32, #tpu.memory_space<vmem>>, %arg5: memref<1x8x128xf32, #tpu.memory_space<vmem>>) attributes {dimension_semantics = [#tpu.dimension_semantics<parallel>], iteration_bounds = array<i64: 3>, scalar_prefetch = 0 : i64, scratch_operands = 0 : i64, tpu.core_type = #tpu.core_type<tc>, window_params = [{transform_indices = @transform_0, window_bounds = array<i64: 1>}, {transform_indices = @transform_1, window_bounds = array<i64: 8, 256>}, {transform_indices = @transform_2, window_bounds = array<i64: 8, 1>}, {transform_indices = @transform_3, window_bounds = array<i64: 8, 1>}, {transform_indices = @transform_4, window_bounds = array<i64: 1, 8, 128>}]} {
    %c0 = arith.constant 0 : index
    %c0_0 = arith.constant 0 : index
    %0 = vector.load %arg2[%c0, %c0_0] : memref<8x256xf32, #tpu.memory_space<vmem>>, vector<8x256xf32>
    %cst = arith.constant dense<0xFF800000> : vector<8xf32>
    %1 = vector.multi_reduction <maximumf>, %0, %cst [1] : vector<8x256xf32> to vector<8xf32>
    %2 = vector.shape_cast %1 : vector<8xf32> to vector<8x1xf32>
    %3 = vector.broadcast %2 : vector<8x1xf32> to vector<8x256xf32>
    %4 = arith.subf %0, %3 : vector<8x256xf32>
    %5 = math.exp %4 : vector<8x256xf32>
    %cst_1 = arith.constant dense<0.000000e+00> : vector<8xf32>
    %6 = vector.multi_reduction <add>, %5, %cst_1 [1] : vector<8x256xf32> to vector<8xf32>
    %7 = vector.shape_cast %6 : vector<8xf32> to vector<8x1xf32>
    %8 = math.log %7 : vector<8x1xf32>
    %c0_2 = arith.constant 0 : index
    %9 = memref.load %arg1[%c0_2] : memref<1xf32, #tpu.memory_space<smem>>
    %10 = tpu.iota {dimensions = array<i32: 1>} : vector<1x256xi32>
    %c0_3 = arith.constant 0 : index
    %c0_4 = arith.constant 0 : index
    %11 = vector.load %arg3[%c0_3, %c0_4] : memref<8x1xi32, #tpu.memory_space<vmem>>, vector<8x1xi32>
    %12 = vector.broadcast %10 : vector<1x256xi32> to vector<8x256xi32>
    %13 = vector.broadcast %11 : vector<8x1xi32> to vector<8x256xi32>
    %14 = arith.cmpi eq, %12, %13 : vector<8x256xi32>
    %cst_5 = arith.constant 0.000000e+00 : f32
    %15 = vector.broadcast %9 : f32 to vector<8x256xf32>
    %16 = vector.broadcast %cst_5 : f32 to vector<8x256xf32>
    %17 = arith.select %14, %15, %16 : vector<8x256xi1>, vector<8x256xf32>
    %c0_6 = arith.constant 0 : index
    %c0_7 = arith.constant 0 : index
    %18 = vector.load %arg4[%c0_6, %c0_7] : memref<8x1xi32, #tpu.memory_space<vmem>>, vector<8x1xi32>
    %19 = vector.broadcast %10 : vector<1x256xi32> to vector<8x256xi32>
    %20 = vector.broadcast %18 : vector<8x1xi32> to vector<8x256xi32>
    %21 = arith.cmpi eq, %19, %20 : vector<8x256xi32>
    %cst_8 = arith.constant 1.000000e+00 : f32
    %22 = arith.subf %cst_8, %9 : f32
    %cst_9 = arith.constant 0.000000e+00 : f32
    %23 = vector.broadcast %22 : f32 to vector<8x256xf32>
    %24 = vector.broadcast %cst_9 : f32 to vector<8x256xf32>
    %25 = arith.select %21, %23, %24 : vector<8x256xi1>, vector<8x256xf32>
    %26 = arith.addf %17, %25 : vector<8x256xf32>
    %27 = arith.mulf %26, %4 : vector<8x256xf32>
    %cst_10 = arith.constant dense<0.000000e+00> : vector<8xf32>
    %28 = vector.multi_reduction <add>, %27, %cst_10 [1] : vector<8x256xf32> to vector<8xf32>
    %29 = vector.shape_cast %28 : vector<8xf32> to vector<8x1xf32>
    %30 = arith.subf %8, %29 : vector<8x1xf32>
    %c8_i32 = arith.constant 8 : i32
    %31 = arith.muli %arg0, %c8_i32 : i32
    %32 = tpu.iota {dimensions = array<i32: 0>} : vector<8x1xi32>
    %33 = vector.broadcast %31 : i32 to vector<8x1xi32>
    %34 = arith.addi %33, %32 : vector<8x1xi32>
    %c20_i32 = arith.constant 20 : i32
    %35 = vector.broadcast %c20_i32 : i32 to vector<8x1xi32>
    %36 = arith.cmpi slt, %34, %35 : vector<8x1xi32>
    %cst_11 = arith.constant 0.000000e+00 : f32
    %37 = vector.broadcast %cst_11 : f32 to vector<8x1xf32>
    %38 = arith.select %36, %30, %37 : vector<8x1xi1>, vector<8x1xf32>
    %39 = vector.shape_cast %38 : vector<8x1xf32> to vector<1x8x1xf32>
    %cst_12 = arith.constant dense<0.000000e+00> : vector<1xf32>
    %40 = vector.multi_reduction <add>, %39, %cst_12 [1, 2] : vector<1x8x1xf32> to vector<1xf32>
    %41 = vector.shape_cast %40 : vector<1xf32> to vector<1x1x1xf32>
    %42 = vector.extract %41[0, 0, 0] : f32 from vector<1x1x1xf32>
    %cst_13 = arith.constant 0.000000e+00 : f32
    %43 = vector.broadcast %cst_13 : f32 to vector<1x8x128xf32>
    %44 = vector.broadcast %42 : f32 to vector<1x8x128xf32>
    %45 = arith.addf %43, %44 : vector<1x8x128xf32>
    %c0_14 = arith.constant 0 : index
    %c0_15 = arith.constant 0 : index
    %c0_16 = arith.constant 0 : index
    %46 = vector.load %arg5[%c0_14, %c0_15, %c0_16] : memref<1x8x128xf32, #tpu.memory_space<vmem>>, vector<1x8x128xf32>
    tpu.vector_store %arg5[%c0_14, %c0_15, %c0_16], %45 {strides = array<i32>} : memref<1x8x128xf32, #tpu.memory_space<vmem>>, vector<1x8x128xf32>,
    return
  }
  func.func @transform_0(%arg0: i32) -> i32 {
    %c0_i32 = arith.constant 0 : i32
    %c0_i32_0 = arith.constant 0 : i32
    return %c0_i32 : i32
  }
  func.func @transform_1(%arg0: i32) -> (i32, i32) {
    %c0_i32 = arith.constant 0 : i32
    %c0_i32_0 = arith.constant 0 : i32
    return %arg0, %c0_i32 : i32, i32
  }
  func.func @transform_2(%arg0: i32) -> (i32, i32) {
    %c0_i32 = arith.constant 0 : i32
    %c0_i32_0 = arith.constant 0 : i32
    return %arg0, %c0_i32 : i32, i32
  }
  func.func @transform_3(%arg0: i32) -> (i32, i32) {
    %c0_i32 = arith.constant 0 : i32
    %c0_i32_0 = arith.constant 0 : i32
    return %arg0, %c0_i32 : i32, i32
  }
  func.func @transform_4(%arg0: i32) -> (i32, i32, i32) {
    %c0_i32 = arith.constant 0 : i32
    %c0_i32_0 = arith.constant 0 : i32
    %c0_i32_1 = arith.constant 0 : i32
    return %arg0, %c0_i32, %c0_i32_0 : i32, i32, i32
  }
}

</mosaic_0001>

<llo_original>
// kernel: tpu_custom_call.1
$region0: #{tpu_custom_call.1}
  #allocation0 [shape = 'u32[]', space=smem, size = 0x4, offset = 0x4, fixed_abs, tag = 'smem constant byte address 0x4 - core index']
  #allocation1 [shape = 'u32[72,128]{1,0:T(1,128)}', space=vmem, size = 0x9000, scoped, tag = 'internal scratch']
  #allocation2 [shape = 'f32[1]{0:T(128)S(6)}', space=smem, size = 0x200, scoped, tag = 'scoped memory for tpu_custom_call.1']
  %s0 = inlined_call_operand.<no memory space> [shape: f32[1], index: 0, kind: input, shape index: {}]
  %s1 = inlined_call_operand.vmem [shape: f32[20,256], index: 1, kind: input, shape index: {}]
  %s2 = inlined_call_operand.vmem [shape: s32[20,1], index: 2, kind: input, shape index: {}]
  %s3 = inlined_call_operand.vmem [shape: s32[20,1], index: 3, kind: input, shape index: {}]
  %s4 = inlined_call_operand.hbm [shape: f32[3,8,128], index: 4, kind: output, shape index: {}]
  %s5 = sld [smem:[#allocation0]]
  $region49: #{tpu_custom_call.1} parent=0
    _
  %s7 = ssub.s32 1, %s5
  %s8 = scalar_select 0, %s7, %s5
  %9 = sst [smem:[#allocation2]] %s0
  $region1: #{tpu_custom_call.1} parent=0
    #allocation3 [shape = 'u8[8192]{0}', space=vmem, size = 0x2000, scoped, tag = 'output window, operand 0']
    #allocation4 [shape = 's32[2]{0}', space=sflag, size = 0x8, scoped, tag = 'scoped memory for tpu_custom_call.1']
    %10 = vsyncpa [#allocation4], 0
    %s11 = scalar_lea.sflag [#allocation4], 1
    %12 = vsyncpa %s11, 0
    loop: start=0, step=1, limit=5
    $region2: #{tpu_custom_call.1} parent=1 // loop_pre_header
      _
    $region3: #{tpu_custom_call.1} parent=1 // loop_header
      %s14 = sphi 0, %s18
      %p15 = scmp.ge.s32.totalorder %s14, 5
      %s22 = sphi 0, %s22
      %s24 = sphi 0, %s22
      %s25 = sphi 0, %s24
      %s39 = sphi 0, %s25
      %s45 = sphi 0, %s47
      %s48 = sphi 0, %s45
      %s49 = sphi 0, %s48
      %s65 = sphi 0, %s49
      %s71 = sphi 0, %s73
      %s74 = sphi 0, %s71
      %s75 = sphi 0, %s74
      %s91 = sphi 0, %s75
      %s97 = sphi 0, %s99
      %s100 = sphi 0, %s97
      %s101 = sphi 0, %s100
      %s117 = sphi 0, %s101
      %s123 = sphi 0, %s125
      %s126 = sphi 0, %s123
      %s127 = sphi 0, %s126
      %s143 = sphi 0, %s127
    $region4: #{tpu_custom_call.1} parent=1 // loop_header_branch
      %17 = sbr.rel (%p15) target = $region8
    $region5: #{tpu_custom_call.1} parent=1 // loop_body
      %s19 = ssub.s32 %s14, 1
      %s20 = ssub.s32 %s14, 2
      %s21 = sadd.s32 %s14, 1
      %s23 = sadd.s32 %s22, 1
      %p26 = scmp.eq.s32.totalorder %s14, 2
      %p27 = scmp.ne.s32.totalorder %s22, %s24
      %p28 = scmp.eq.s32.totalorder %s14, 0
      %p29 = por %p27, %p28
      %p30 = scmp.ne.s32.totalorder %s22, %s24
      %p31 = scmp.eq.s32.totalorder %s19, 2
      %p32 = por %p30, %p31
      %p33 = scmp.ne.s32.totalorder %s24, %s25
      %p34 = scmp.eq.s32.totalorder %s19, 0
      %p35 = por %p33, %p34
      %p36 = scmp.ne.s32.totalorder %s24, %s25
      %p37 = scmp.eq.s32.totalorder %s20, 2
      %p38 = por %p36, %p37
      %p40 = scmp.ne.s32.totalorder %s25, %s39
      %p41 = scmp.eq.s32.totalorder %s20, 0
      %p42 = por %p40, %p41
      %s43 = ssub.s32 %s14, %s21
      %p44 = scmp.eq.s32.totalorder %s43, 0
      %s46 = sadd.s32 %s45, 1
      %s47 = scalar_select %p44, %s45, %s46
      %p50 = pneg %p44
      %p51 = scmp.eq.s32.totalorder %s14, 2
      %p52 = por %p50, %p51
      %p53 = scmp.ne.s32.totalorder %s45, %s48
      %p54 = scmp.eq.s32.totalorder %s14, 0
      %p55 = por %p53, %p54
      %p56 = scmp.ne.s32.totalorder %s45, %s48
      %p57 = scmp.eq.s32.totalorder %s19, 2
      %p58 = por %p56, %p57
      %p59 = scmp.ne.s32.totalorder %s48, %s49
      %p60 = scmp.eq.s32.totalorder %s19, 0
      %p61 = por %p59, %p60
      %p62 = scmp.ne.s32.totalorder %s48, %s49
      %p63 = scmp.eq.s32.totalorder %s20, 2
      %p64 = por %p62, %p63
      %p66 = scmp.ne.s32.totalorder %s49, %s65
      %p67 = scmp.eq.s32.totalorder %s20, 0
      %p68 = por %p66, %p67
      %s69 = ssub.s32 %s14, %s21
      %p70 = scmp.eq.s32.totalorder %s69, 0
      %s72 = sadd.s32 %s71, 1
      %s73 = scalar_select %p70, %s71, %s72
      %p76 = pneg %p70
      %p77 = scmp.eq.s32.totalorder %s14, 2
      %p78 = por %p76, %p77
      %p79 = scmp.ne.s32.totalorder %s71, %s74
      %p80 = scmp.eq.s32.totalorder %s14, 0
      %p81 = por %p79, %p80
      %p82 = scmp.ne.s32.totalorder %s71, %s74
      %p83 = scmp.eq.s32.totalorder %s19, 2
      %p84 = por %p82, %p83
      %p85 = scmp.ne.s32.totalorder %s74, %s75
      %p86 = scmp.eq.s32.totalorder %s19, 0
      %p87 = por %p85, %p86
      %p88 = scmp.ne.s32.totalorder %s74, %s75
      %p89 = scmp.eq.s32.totalorder %s20, 2
      %p90 = por %p88, %p89
      %p92 = scmp.ne.s32.totalorder %s75, %s91
      %p93 = scmp.eq.s32.totalorder %s20, 0
      %p94 = por %p92, %p93
      %s95 = ssub.s32 %s14, %s21
      %p96 = scmp.eq.s32.totalorder %s95, 0
      %s98 = sadd.s32 %s97, 1
      %s99 = scalar_select %p96, %s97, %s98
      %p102 = pneg %p96
      %p103 = scmp.eq.s32.totalorder %s14, 2
      %p104 = por %p102, %p103
      %p105 = scmp.ne.s32.totalorder %s97, %s100
      %p106 = scmp.eq.s32.totalorder %s14, 0
      %p107 = por %p105, %p106
      %p108 = scmp.ne.s32.totalorder %s97, %s100
      %p109 = scmp.eq.s32.totalorder %s19, 2
      %p110 = por %p108, %p109
      %p111 = scmp.ne.s32.totalorder %s100, %s101
      %p112 = scmp.eq.s32.totalorder %s19, 0
      %p113 = por %p111, %p112
      %p114 = scmp.ne.s32.totalorder %s100, %s101
      %p115 = scmp.eq.s32.totalorder %s20, 2
      %p116 = por %p114, %p115
      %p118 = scmp.ne.s32.totalorder %s101, %s117
      %p119 = scmp.eq.s32.totalorder %s20, 0
      %p120 = por %p118, %p119
      %s121 = ssub.s32 %s14, %s21
      %p122 = scmp.eq.s32.totalorder %s121, 0
      %s124 = sadd.s32 %s123, 1
      %s125 = scalar_select %p122, %s123, %s124
      %p128 = pneg %p122
      %p129 = scmp.eq.s32.totalorder %s14, 2
      %p130 = por %p128, %p129
      %p131 = scmp.ne.s32.totalorder %s123, %s126
      %p132 = scmp.eq.s32.totalorder %s14, 0
      %p133 = por %p131, %p132
      %p134 = scmp.ne.s32.totalorder %s123, %s126
      %p135 = scmp.eq.s32.totalorder %s19, 2
      %p136 = por %p134, %p135
      %p137 = scmp.ne.s32.totalorder %s126, %s127
      %p138 = scmp.eq.s32.totalorder %s19, 0
      %p139 = por %p137, %p138
      %p140 = scmp.ne.s32.totalorder %s126, %s127
      %p141 = scmp.eq.s32.totalorder %s20, 2
      %p142 = por %p140, %p141
      %p144 = scmp.ne.s32.totalorder %s127, %s143
      %p145 = scmp.eq.s32.totalorder %s20, 0
      %p146 = por %p144, %p145
      %p147 = scmp.le.s32.totalorder 1, %s14
      %p148 = scmp.lt.s32.totalorder %s14, 4
      %p149 = pnand %p147, %p148
      %p150 = pneg %p149
      // Predicated region
      $region9: #{tpu_custom_call.1} parent=5 // pred_check
        _
      $region10: #{tpu_custom_call.1} parent=5 // pred_check_branch
        %152 = sbr.rel (%p149) target = $region12
      $region11: #{tpu_custom_call.1} parent=5 // pred_region
        %s153 = ssub.s32 %s14, 1
        // Predicated region
        $region13: #{tpu_custom_call.1} parent=11 // pred_check
          %p154 = pneg %p35
        $region14: #{tpu_custom_call.1} parent=11 // pred_check_branch
          %156 = sbr.rel (%p154) target = $region16
        $region15: #{tpu_custom_call.1} parent=11 // pred_region
          _
        $region16: #{tpu_custom_call.1} parent=11 // pred_fallthru
          _
      $region12: #{tpu_custom_call.1} parent=5 // pred_fallthru
        _
      %p157 = scmp.lt.s32.totalorder %s14, 3
      // Predicated region
      $region17: #{tpu_custom_call.1} parent=5 // pred_check
        %p158 = pneg %p157
      $region18: #{tpu_custom_call.1} parent=5 // pred_check_branch
        %160 = sbr.rel (%p158) target = $region20
      $region19: #{tpu_custom_call.1} parent=5 // pred_region
        // Predicated region
        $region21: #{tpu_custom_call.1} parent=19 // pred_check
          %p161 = pneg %p55
        $region22: #{tpu_custom_call.1} parent=19 // pred_check_branch
          %163 = sbr.rel (%p161) target = $region24
        $region23: #{tpu_custom_call.1} parent=19 // pred_region
          %p164 = scmp.lt.s32.totalorder %s14, 2
          %s165 = scalar_select %p164, %s14, 2
          %s166 = smul.addr %s165, 2
          %s167 = smul.addr %s166, 8
          %s168 = scalar_lea.vmem %s1, %s167
        $region24: #{tpu_custom_call.1} parent=19 // pred_fallthru
          _
        // Predicated region
        $region25: #{tpu_custom_call.1} parent=19 // pred_check
          %p169 = pneg %p81
        $region26: #{tpu_custom_call.1} parent=19 // pred_check_branch
          %171 = sbr.rel (%p169) target = $region28
        $region27: #{tpu_custom_call.1} parent=19 // pred_region
          %p172 = scmp.lt.s32.totalorder %s14, 2
          %s173 = scalar_select %p172, %s14, 2
          %s174 = smul.addr %s173, 8
          %s175 = scalar_lea.vmem %s2, %s174
        $region28: #{tpu_custom_call.1} parent=19 // pred_fallthru
          _
        // Predicated region
        $region29: #{tpu_custom_call.1} parent=19 // pred_check
          %p176 = pneg %p107
        $region30: #{tpu_custom_call.1} parent=19 // pred_check_branch
          %178 = sbr.rel (%p176) target = $region32
        $region31: #{tpu_custom_call.1} parent=19 // pred_region
          %p179 = scmp.lt.s32.totalorder %s14, 2
          %s180 = scalar_select %p179, %s14, 2
          %s181 = smul.addr %s180, 8
          %s182 = scalar_lea.vmem %s3, %s181
        $region32: #{tpu_custom_call.1} parent=19 // pred_fallthru
          _
      $region20: #{tpu_custom_call.1} parent=5 // pred_fallthru
        _
      %p183 = scmp.le.s32.totalorder 1, %s14
      %p184 = scmp.lt.s32.totalorder %s14, 4
      %p185 = pnand %p183, %p184
      %p186 = pneg %p185
      // Predicated region
      $region33: #{tpu_custom_call.1} parent=5 // pred_check
        _
      $region34: #{tpu_custom_call.1} parent=5 // pred_check_branch
        %188 = sbr.rel (%p185) target = $region36
      $region35: #{tpu_custom_call.1} parent=5 // pred_region
        %s189 = ssub.s32 %s14, 1
        %p190 = pneg %p35
        %p191 = pneg %p32
        %p192 = scmp.lt.s32.totalorder %s19, 2
        %s193 = scalar_select %p192, %s19, 2
        %s194 = smul.addr %s193, 2
        %s195 = smul.addr %s194, 8
        %s196 = scalar_lea.vmem %s1, %s195
        %p197 = pneg %p61
        %p198 = pneg %p58
        %p199 = scmp.lt.s32.totalorder %s19, 2
        %s200 = scalar_select %p199, %s19, 2
        %s201 = smul.addr %s200, 8
        %s202 = scalar_lea.vmem %s2, %s201
        %p203 = pneg %p87
        %p204 = pneg %p84
        %p205 = scmp.lt.s32.totalorder %s19, 2
        %s206 = scalar_select %p205, %s19, 2
        %s207 = smul.addr %s206, 8
        %s208 = scalar_lea.vmem %s3, %s207
        %p209 = pneg %p113
        %p210 = pneg %p110
        %p211 = pneg %p139
        %p212 = pneg %p136
        %s213 = sand.u32 %s126, 1
        %s214 = scalar_lea.sflag [#allocation4], %s213
        %s215 = sand.u32 %s126, 1
        %s216 = smul.addr %s215, 8
        %s217 = scalar_lea.vmem [#allocation3], %s216
        %p218 = scmp.lt.s32.totalorder %s19, 2
        %s219 = scalar_select %p218, %s19, 2
        %s220 = smul.addr %s219, 2
        %s221 = smul.addr %s220, 8
        %s222 = scalar_lea.vmem %s1, %s221
        %p223 = scmp.lt.s32.totalorder %s19, 2
        %s224 = scalar_select %p223, %s19, 2
        %s225 = smul.addr %s224, 8
        %s226 = scalar_lea.vmem %s2, %s225
        %p227 = scmp.lt.s32.totalorder %s19, 2
        %s228 = scalar_select %p227, %s19, 2
        %s229 = smul.addr %s228, 8
        %s230 = scalar_lea.vmem %s3, %s229
        %v231 = vld [vmem:[%s222] sm:$0xff]
        %v232 = vld [vmem:[%s222 + $0x8] sm:$0xff]
        %v233 = vmax.f32 %v231, %v232
        %234 = vmax.xlane.f32.xlu0 %v233
        %v235 = vpop.xlane.xlu0 %234
        %v236 = vsub.f32 %v231, %v235
        %v237 = vsub.f32 %v232, %v235
        %v238 = vmul.f32 %v236, 1.442695
        %v239 = vpow.pop %v238
        %v240 = vmul.f32 %v237, 1.442695
        %v241 = vpow.pop %v240
        %v242 = vadd.f32 %v239, %v241
        %243 = vadd.xlane.f32.xlu0 %v242
        %v244 = vpop.xlane.xlu0 %243
        %v245 = vlog2.pop %v244
        %v246 = vmul.f32 %v245, 0.6931472
        %s247 = sld [smem:[#allocation2]]
        %v248 = vlaneseq
        %v249 = vand.u32 %v248, 127
        %v250 = vadd.s32 %v249, 128
        %v251 = vld [vmem:[%s226] sm:$0xff]
        %252 = vset.pattern.permute.xlu0 0
        %253 = vperm.xlu0 %252, %v251
        %v254 = vpop.permute.xlu0 %253
        %vm255 = vcmp.eq.s32.totalorder %v249, %v254
        %vm256 = vcmp.eq.s32.totalorder %v250, %v254
        %v257 = vstv %s247
        %v258 = vsel %vm255, %v257, 0.0
        %v259 = vsel %vm256, %v257, 0.0
        %v260 = vld [vmem:[%s230] sm:$0xff]
        %261 = vset.pattern.permute.xlu0 0
        %262 = vperm.xlu0 %261, %v260
        %v263 = vpop.permute.xlu0 %262
        %vm264 = vcmp.eq.s32.totalorder %v249, %v263
        %vm265 = vcmp.eq.s32.totalorder %v250, %v263
        %s266 = ssub.f32 1.0, %s247
        %v267 = vstv %s266
        %v268 = vsel %vm264, %v267, 0.0
        %v269 = vsel %vm265, %v267, 0.0
        %v270 = vadd.f32 %v258, %v268
        %v271 = vadd.f32 %v259, %v269
        %v272 = vmul.f32 %v270, %v236
        %v273 = vmul.f32 %v271, %v237
        %v274 = vadd.f32 %v272, %v273
        %275 = vadd.xlane.f32.xlu0 %v274
        %v276 = vpop.xlane.xlu0 %275
        %v277 = vsub.f32 %v246, %v276
        %s278 = smul.u32 %s19, 8
        %v279 = vlaneseq
        %v280 = vshrl.u32 %v279, 7
        %v281 = vstv %s278
        %v282 = vadd.s32 %v281, %v280
        %vm283 = vcmp.lt.s32.totalorder %v282, 20
        %v284 = vsel %vm283, %v277, 0.0
        %vm285 = vcmask 7168
        %v286 = vsel %vm285, %v284, 0.0
        %287 = vadd.xlane.f32.xlu0 %v286
        %v288 = vpop.xlane.xlu0 %287
        %v289 = vrot.slane %v288, 4
        %v290 = vadd.f32 %v288, %v289
        %v291 = vrot.slane %v290, 2
        %v292 = vadd.f32 %v290, %v291
        %v293 = vrot.slane %v292, 1
        %v294 = vadd.f32 %v292, %v293
        %s295 = vtos %v294
        %v296 = vstv %s295
        %v297 = vadd.f32 %v296, 0.0
        %298 = vst [vmem:[%s217] sm:$0xff] %v297
        %s299 = sand.u32 %s126, 1
        %s300 = scalar_lea.sflag [#allocation4], %s299
        %s301 = sand.u32 %s126, 1
        %s302 = smul.addr %s301, 8
        %s303 = scalar_lea.vmem [#allocation3], %s302
        // Predicated region
        $region37: #{tpu_custom_call.1} parent=35 // pred_check
          %p304 = pneg %p136
        $region38: #{tpu_custom_call.1} parent=35 // pred_check_branch
          %306 = sbr.rel (%p304) target = $region40
        $region39: #{tpu_custom_call.1} parent=35 // pred_region
          %308 = vsyncadd %s300, 0
          %s309 = smul.addr %s19, 8
          %s310 = scalar_lea.hbm %s4, %s309
          %s312 = sshll.u32 %s303, 4
          %s313 = int_to_ptr.vmem [resolvable:$true] %s312
          %s314 = sshll.u32 %s310, 4
          %s315 = int_to_ptr.hbm [resolvable:$true] %s314
          %317 = dma.vmem_to_hbm [thread:$0]  %s313, 128, %s315, %s300
        $region40: #{tpu_custom_call.1} parent=35 // pred_fallthru
          _
      $region36: #{tpu_custom_call.1} parent=5 // pred_fallthru
        _
      %p318 = scmp.le.s32.totalorder 2, %s14
      // Predicated region
      $region41: #{tpu_custom_call.1} parent=5 // pred_check
        %p319 = pneg %p318
      $region42: #{tpu_custom_call.1} parent=5 // pred_check_branch
        %321 = sbr.rel (%p319) target = $region44
      $region43: #{tpu_custom_call.1} parent=5 // pred_region
        %s322 = ssub.s32 %s14, 2
        // Predicated region
        $region45: #{tpu_custom_call.1} parent=43 // pred_check
          %p323 = pneg %p142
        $region46: #{tpu_custom_call.1} parent=43 // pred_check_branch
          %325 = sbr.rel (%p323) target = $region48
        $region47: #{tpu_custom_call.1} parent=43 // pred_region
          %s326 = sand.u32 %s127, 1
          %s327 = scalar_lea.sflag [#allocation4], %s326
          %s328 = sand.u32 %s127, 1
          %s329 = smul.addr %s328, 8
          %s330 = scalar_lea.vmem [#allocation3], %s329
          %332 = dma.done %s327, 128
        $region48: #{tpu_custom_call.1} parent=43 // pred_fallthru
          _
      $region44: #{tpu_custom_call.1} parent=5 // pred_fallthru
        _
    $region6: #{tpu_custom_call.1} parent=1 // loop_footer
      %s18 = sadd.s32 1, %s14
    $region7: #{tpu_custom_call.1} parent=1 // loop_footer_branch
      %13 = sbr.rel target = $region3
    $region8: #{tpu_custom_call.1} parent=1 // loop_exit
      _
    %333 = vsyncpa [#allocation4], 1
    %s334 = scalar_lea.sflag [#allocation4], 1
    %335 = vsyncpa %s334, 1

</llo_original>
